<compile_context>
chip_gen: v5e
topology: v5e:2x2
jax: 0.10.0
libtpu: 0.0.40
codegen_flags: <defaults>
</compile_context>

<pallas_src>
import jax
import jax.numpy as jnp
from jax.experimental import pallas as pl
from jax.experimental.pallas import tpu as pltpu

# ------------------------- small, module-consistent dims -------------------------
N          = 2     # batch
C_IN       = 4     # video input channels
T, H, W    = 8, 16, 16
IN_CH      = 128   # "in_channels" of the head (512 in the real model)
MID_DIM    = 128   # "midddle_dim" (512 in the real model)
OUT_CH     = 128   # "out_channels" (must equal final linear's input, as in the module)
N_CLASSES  = 16    # opt.n_classes
LANE       = 128   # padded logits columns -> lane-dense output store
ROW_PAD    = 8     # padded batch rows     -> full (8,128) output tile

_VMEM = pl.BlockSpec(memory_space=pltpu.MemorySpace.VMEM)


# ---------------------------------------------------------------------------------
# Single fused kernel: pool -> project -> relu(fc1) -> relu(fc2) -> linear (padded).
# ---------------------------------------------------------------------------------
def fused_kernel(x_ref, wfs_ref, bf_ref, w1_ref, b1_ref, w2_ref, b2_ref,
                 w3_ref, b3_ref, o_ref, f_scratch):
    # x_ref:    (N*C, S)        flattened video; N*C == 8 -> reduction uses all 8 sublanes
    # wfs_ref:  (N*C, IN_CH)    backbone projection weight, row r = w_feat[r % C] / S
    # bf_ref:   (1, IN_CH)      backbone projection bias
    # w1/w2/w3: bf16 MXU weights (w3 zero-padded to LANE columns); biases f32
    # o_ref:    (ROW_PAD, LANE) full (8,128) tile -> unmasked lane-dense store
    # f_scratch:(ROW_PAD, IN_CH) f32 accumulator for the projected features
    nc, s = x_ref.shape

    # ---- global average pool: VALU slab accumulation + one small cross-lane (XLU) reduce ----
    acc = x_ref[:, 0:LANE]
    for j in range(1, s // LANE):                         # static, unrolled (S % 128 == 0)
        acc = acc + x_ref[:, j * LANE:(j + 1) * LANE]
    pooled = jnp.sum(acc, axis=-1, keepdims=True)         # (N*C, 1)

    # ---- synthetic backbone projection (1/S folded into wfs; no concatenate, no reshape) ----
    prod = pooled * wfs_ref[...]                          # (N*C, IN_CH) VPU broadcast FMA
    f_scratch[...] = jnp.zeros_like(f_scratch)            # zero the pad rows (hygiene)
    for n in range(N):                                    # tiny static batch loop
        f_scratch[n:n + 1, :] = jnp.sum(
            prod[n * C_IN:(n + 1) * C_IN, :], axis=0, keepdims=True)
    f = f_scratch[...] + bf_ref[...]                      # (ROW_PAD, IN_CH) full tile

    # ---- head MLP: relu(fc1) -> relu(fc2) -> linear, all full (8,128) tiles ----
    h = jnp.dot(f, w1_ref[...].astype(jnp.float32),
                preferred_element_type=jnp.float32) + b1_ref[...]
    h = jnp.maximum(h, 0.0)
    h = jnp.dot(h, w2_ref[...].astype(jnp.float32),
                preferred_element_type=jnp.float32) + b2_ref[...]
    h = jnp.maximum(h, 0.0)
    o_ref[...] = (jnp.dot(h, w3_ref[...].astype(jnp.float32),
                          preferred_element_type=jnp.float32) + b3_ref[...])


# ---------------------------------------------------------------------------------
# Parameter prep (one-time) + full-module forward wrapper.
# ---------------------------------------------------------------------------------
def prepare_kernel_params(p, spatial):
    """Fold 1/S into the backbone projection weight and tile it per (n,c) row, zero-pad the
    final layer to 128 lane-dense columns, and store the three MXU weights as bf16.
    Activations / biases stay f32 (v5e has no bf16 VALU/EUP)."""
    wfs = (p["w_feat"] / float(spatial)).astype(jnp.float32)        # (C, IN_CH)
    wfs_tiled = jnp.tile(wfs, (N, 1))                               # (N*C, IN_CH), rows match x2d
    w3p = jnp.zeros((OUT_CH, LANE), jnp.float32).at[:, :N_CLASSES].set(p["w3"])
    b3p = jnp.zeros((1, LANE), jnp.float32).at[:, :N_CLASSES].set(p["b3"])
    return {
        "wfs": wfs_tiled,
        "bf": p["b_feat"].astype(jnp.float32),
        "w1": p["w1"].astype(jnp.bfloat16), "b1": p["b1"].astype(jnp.float32),
        "w2": p["w2"].astype(jnp.bfloat16), "b2": p["b2"].astype(jnp.float32),
        "w3p": w3p.astype(jnp.bfloat16), "b3p": b3p,
    }


@jax.jit
def model_plus_linear_layers(x_nchw, kp):
    """Returns the padded (ROW_PAD, LANE) logits tile; the consumer slices [:N, :N_CLASSES]
    lazily (deferring the slice keeps the jitted program to just the pallas_call)."""
    n, c, t, h, w = x_nchw.shape
    s = t * h * w
    assert n * c == ROW_PAD, "toy layout assumes N*C == 8 (one full sublane tile)"
    assert s % LANE == 0, "spatial size must be a multiple of 128 lanes"
    # TODO(synk): at real model dims (512-wide head, large batch, full 3D-ResNet T*H*W) add a
    #   batch grid axis with dimension_semantics=("parallel",) (shards across v7x's 2 TCs),
    #   use >=256-row M tiles for the v6e/v7x 256^2 MXUs (128-aligned is already optimal on
    #   v5e), keep head weights resident via constant index_maps, and re-derive tile sizes /
    #   vmem_limit_bytes against v7x's 64 MiB VMEM.
    x2d = x_nchw.reshape(n * c, s)          # contiguous row-major reshape: free

    flops = (n * c * s                       # pooling adds
             + 2 * n * c * IN_CH             # projection broadcast FMAs + group-sum adds
             + 2 * ROW_PAD * IN_CH * MID_DIM
             + 2 * ROW_PAD * MID_DIM * OUT_CH
             + 2 * ROW_PAD * OUT_CH * LANE)
    bytes_accessed = (4 * (n * c * s + n * c * IN_CH + IN_CH)          # x, wfs, bf (f32)
                      + 2 * (IN_CH * MID_DIM + MID_DIM * OUT_CH + OUT_CH * LANE)  # bf16 weights
                      + 4 * (MID_DIM + OUT_CH + LANE)                  # f32 biases
                      + 4 * ROW_PAD * LANE)                            # output tile

    return pl.pallas_call(
        fused_kernel,
        out_shape=jax.ShapeDtypeStruct((ROW_PAD, LANE), jnp.float32),
        in_specs=[_VMEM] * 9,
        out_specs=_VMEM,
        scratch_shapes=[pltpu.VMEM((ROW_PAD, IN_CH), jnp.float32)],
        cost_estimate=pl.CostEstimate(flops=flops, transcendentals=0,
                                      bytes_accessed=bytes_accessed),
    )(x2d, kp["wfs"], kp["bf"], kp["w1"], kp["b1"], kp["w2"], kp["b2"],
      kp["w3p"], kp["b3p"])


# ---------------------------------------------------------------------------------
# Params + pure-JAX reference (mirrors the PyTorch forward).
# ---------------------------------------------------------------------------------
def init_params(key):
    ks = jax.random.split(key, 8)
    scale = 0.02
    return {
        # synthetic backbone projection
        "w_feat": scale * jax.random.normal(ks[0], (C_IN, IN_CH), jnp.float32),
        "b_feat": scale * jax.random.normal(ks[1], (1, IN_CH), jnp.float32),
        # fc1: in_channels -> middle_dim
        "w1": scale * jax.random.normal(ks[2], (IN_CH, MID_DIM), jnp.float32),
        "b1": scale * jax.random.normal(ks[3], (1, MID_DIM), jnp.float32),
        # fc2: middle_dim -> out_channels
        "w2": scale * jax.random.normal(ks[4], (MID_DIM, OUT_CH), jnp.float32),
        "b2": scale * jax.random.normal(ks[5], (1, OUT_CH), jnp.float32),
        # linear: out_channels -> n_classes
        "w3": scale * jax.random.normal(ks[6], (OUT_CH, N_CLASSES), jnp.float32),
        "b3": scale * jax.random.normal(ks[7], (1, N_CLASSES), jnp.float32),
    }


def reference_forward(x_nchw, p):
    n, c, t, h, w = x_nchw.shape
    pooled = jnp.mean(x_nchw.reshape(n, c, -1), axis=-1)
    f = pooled @ p["w_feat"] + p["b_feat"]
    h1 = jnp.maximum(f @ p["w1"] + p["b1"], 0.0)
    h2 = jnp.maximum(h1 @ p["w2"] + p["b2"], 0.0)
    return h2 @ p["w3"] + p["b3"]


if __name__ == "__main__":
    key = jax.random.PRNGKey(0)
    k_x, k_p = jax.random.split(key)
    x = jax.random.normal(k_x, (N, C_IN, T, H, W), jnp.float32)   # NCTHW video input
    params = init_params(k_p)
    kparams = prepare_kernel_params(params, T * H * W)

    out_padded = model_plus_linear_layers(x, kparams)
    out_padded = jax.block_until_ready(out_padded)
    logits = out_padded[:N, :N_CLASSES]      # consumer-side slice of the padded (8,128) tile

    ref = reference_forward(x, params)
    assert logits.shape == (N, N_CLASSES), logits.shape
    # bf16-stored weights vs. the f32 reference -> slightly wider (still tight) tolerance.
    assert jnp.allclose(logits, ref, atol=1e-3, rtol=1e-3), "mismatch vs reference"

    print("KERNEL_OK")
</pallas_src>

<mosaic_0001>
module attributes {stable_mosaic.version = 11 : i64} {
  func.func @fused_kernel(%arg0: memref<8x2048xf32, #tpu.memory_space<vmem>>, %arg1: memref<8x128xf32, #tpu.memory_space<vmem>>, %arg2: memref<1x128xf32, #tpu.memory_space<vmem>>, %arg3: memref<128x128xbf16, #tpu.memory_space<vmem>>, %arg4: memref<1x128xf32, #tpu.memory_space<vmem>>, %arg5: memref<128x128xbf16, #tpu.memory_space<vmem>>, %arg6: memref<1x128xf32, #tpu.memory_space<vmem>>, %arg7: memref<128x128xbf16, #tpu.memory_space<vmem>>, %arg8: memref<1x128xf32, #tpu.memory_space<vmem>>, %arg9: memref<8x128xf32, #tpu.memory_space<vmem>>, %arg10: memref<8x128xf32, #tpu.memory_space<vmem>>) attributes {dimension_semantics = [], scalar_prefetch = 0 : i64, scratch_operands = 1 : i64, tpu.core_type = #tpu.core_type<tc>} {
    %c0 = arith.constant 0 : index
    %c0_0 = arith.constant 0 : index
    %0 = vector.load %arg0[%c0, %c0_0] : memref<8x2048xf32, #tpu.memory_space<vmem>>, vector<8x128xf32>
    %c0_1 = arith.constant 0 : index
    %c128 = arith.constant 128 : index
    %1 = vector.load %arg0[%c0_1, %c128] : memref<8x2048xf32, #tpu.memory_space<vmem>>, vector<8x128xf32>
    %2 = arith.addf %0, %1 : vector<8x128xf32>
    %c0_2 = arith.constant 0 : index
    %c256 = arith.constant 256 : index
    %3 = vector.load %arg0[%c0_2, %c256] : memref<8x2048xf32, #tpu.memory_space<vmem>>, vector<8x128xf32>
    %4 = arith.addf %2, %3 : vector<8x128xf32>
    %c0_3 = arith.constant 0 : index
    %c384 = arith.constant 384 : index
    %5 = vector.load %arg0[%c0_3, %c384] : memref<8x2048xf32, #tpu.memory_space<vmem>>, vector<8x128xf32>
    %6 = arith.addf %4, %5 : vector<8x128xf32>
    %c0_4 = arith.constant 0 : index
    %c512 = arith.constant 512 : index
    %7 = vector.load %arg0[%c0_4, %c512] : memref<8x2048xf32, #tpu.memory_space<vmem>>, vector<8x128xf32>
    %8 = arith.addf %6, %7 : vector<8x128xf32>
    %c0_5 = arith.constant 0 : index
    %c640 = arith.constant 640 : index
    %9 = vector.load %arg0[%c0_5, %c640] : memref<8x2048xf32, #tpu.memory_space<vmem>>, vector<8x128xf32>
    %10 = arith.addf %8, %9 : vector<8x128xf32>
    %c0_6 = arith.constant 0 : index
    %c768 = arith.constant 768 : index
    %11 = vector.load %arg0[%c0_6, %c768] : memref<8x2048xf32, #tpu.memory_space<vmem>>, vector<8x128xf32>
    %12 = arith.addf %10, %11 : vector<8x128xf32>
    %c0_7 = arith.constant 0 : index
    %c896 = arith.constant 896 : index
    %13 = vector.load %arg0[%c0_7, %c896] : memref<8x2048xf32, #tpu.memory_space<vmem>>, vector<8x128xf32>
    %14 = arith.addf %12, %13 : vector<8x128xf32>
    %c0_8 = arith.constant 0 : index
    %c1024 = arith.constant 1024 : index
    %15 = vector.load %arg0[%c0_8, %c1024] : memref<8x2048xf32, #tpu.memory_space<vmem>>, vector<8x128xf32>
    %16 = arith.addf %14, %15 : vector<8x128xf32>
    %c0_9 = arith.constant 0 : index
    %c1152 = arith.constant 1152 : index
    %17 = vector.load %arg0[%c0_9, %c1152] : memref<8x2048xf32, #tpu.memory_space<vmem>>, vector<8x128xf32>
    %18 = arith.addf %16, %17 : vector<8x128xf32>
    %c0_10 = arith.constant 0 : index
    %c1280 = arith.constant 1280 : index
    %19 = vector.load %arg0[%c0_10, %c1280] : memref<8x2048xf32, #tpu.memory_space<vmem>>, vector<8x128xf32>
    %20 = arith.addf %18, %19 : vector<8x128xf32>
    %c0_11 = arith.constant 0 : index
    %c1408 = arith.constant 1408 : index
    %21 = vector.load %arg0[%c0_11, %c1408] : memref<8x2048xf32, #tpu.memory_space<vmem>>, vector<8x128xf32>
    %22 = arith.addf %20, %21 : vector<8x128xf32>
    %c0_12 = arith.constant 0 : index
    %c1536 = arith.constant 1536 : index
    %23 = vector.load %arg0[%c0_12, %c1536] : memref<8x2048xf32, #tpu.memory_space<vmem>>, vector<8x128xf32>
    %24 = arith.addf %22, %23 : vector<8x128xf32>
    %c0_13 = arith.constant 0 : index
    %c1664 = arith.constant 1664 : index
    %25 = vector.load %arg0[%c0_13, %c1664] : memref<8x2048xf32, #tpu.memory_space<vmem>>, vector<8x128xf32>
    %26 = arith.addf %24, %25 : vector<8x128xf32>
    %c0_14 = arith.constant 0 : index
    %c1792 = arith.constant 1792 : index
    %27 = vector.load %arg0[%c0_14, %c1792] : memref<8x2048xf32, #tpu.memory_space<vmem>>, vector<8x128xf32>
    %28 = arith.addf %26, %27 : vector<8x128xf32>
    %c0_15 = arith.constant 0 : index
    %c1920 = arith.constant 1920 : index
    %29 = vector.load %arg0[%c0_15, %c1920] : memref<8x2048xf32, #tpu.memory_space<vmem>>, vector<8x128xf32>
    %30 = arith.addf %28, %29 : vector<8x128xf32>
    %cst = arith.constant dense<0.000000e+00> : vector<8xf32>
    %31 = vector.multi_reduction <add>, %30, %cst [1] : vector<8x128xf32> to vector<8xf32>
    %32 = vector.shape_cast %31 : vector<8xf32> to vector<8x1xf32>
    %c0_16 = arith.constant 0 : index
    %c0_17 = arith.constant 0 : index
    %33 = vector.load %arg1[%c0_16, %c0_17] : memref<8x128xf32, #tpu.memory_space<vmem>>, vector<8x128xf32>
    %34 = vector.broadcast %32 : vector<8x1xf32> to vector<8x128xf32>
    %35 = arith.mulf %34, %33 : vector<8x128xf32>
    %cst_18 = arith.constant 0.000000e+00 : f32
    %36 = vector.broadcast %cst_18 : f32 to vector<8x128xf32>
    %c0_19 = arith.constant 0 : index
    %c0_20 = arith.constant 0 : index
    %37 = vector.load %arg10[%c0_19, %c0_20] : memref<8x128xf32, #tpu.memory_space<vmem>>, vector<8x128xf32>
    tpu.vector_store %arg10[%c0_19, %c0_20], %36 {strides = array<i32>} : memref<8x128xf32, #tpu.memory_space<vmem>>, vector<8x128xf32>,
    %38 = vector.extract_strided_slice %35 {offsets = [0, 0], sizes = [4, 128], strides = [1, 1]} : vector<8x128xf32> to vector<4x128xf32>
    %cst_21 = arith.constant dense<0.000000e+00> : vector<128xf32>
    %39 = vector.multi_reduction <add>, %38, %cst_21 [0] : vector<4x128xf32> to vector<128xf32>
    %40 = vector.shape_cast %39 : vector<128xf32> to vector<1x128xf32>
    %c0_22 = arith.constant 0 : index
    %c0_23 = arith.constant 0 : index
    %41 = vector.load %arg10[%c0_22, %c0_23] : memref<8x128xf32, #tpu.memory_space<vmem>>, vector<1x128xf32>
    tpu.vector_store %arg10[%c0_22, %c0_23], %40 {strides = array<i32>} : memref<8x128xf32, #tpu.memory_space<vmem>>, vector<1x128xf32>,
    %42 = vector.extract_strided_slice %35 {offsets = [4, 0], sizes = [4, 128], strides = [1, 1]} : vector<8x128xf32> to vector<4x128xf32>
    %cst_24 = arith.constant dense<0.000000e+00> : vector<128xf32>
    %43 = vector.multi_reduction <add>, %42, %cst_24 [0] : vector<4x128xf32> to vector<128xf32>
    %44 = vector.shape_cast %43 : vector<128xf32> to vector<1x128xf32>
    %c1 = arith.constant 1 : index
    %c0_25 = arith.constant 0 : index
    %45 = vector.load %arg10[%c1, %c0_25] : memref<8x128xf32, #tpu.memory_space<vmem>>, vector<1x128xf32>
    tpu.vector_store %arg10[%c1, %c0_25], %44 {strides = array<i32>} : memref<8x128xf32, #tpu.memory_space<vmem>>, vector<1x128xf32>,
    %c0_26 = arith.constant 0 : index
    %c0_27 = arith.constant 0 : index
    %46 = vector.load %arg10[%c0_26, %c0_27] : memref<8x128xf32, #tpu.memory_space<vmem>>, vector<8x128xf32>
    %c0_28 = arith.constant 0 : index
    %c0_29 = arith.constant 0 : index
    %47 = vector.load %arg2[%c0_28, %c0_29] : memref<1x128xf32, #tpu.memory_space<vmem>>, vector<1x128xf32>
    %48 = vector.broadcast %47 : vector<1x128xf32> to vector<8x128xf32>
    %49 = arith.addf %46, %48 : vector<8x128xf32>
    %c0_30 = arith.constant 0 : index
    %c0_31 = arith.constant 0 : index
    %50 = vector.load %arg3[%c0_30, %c0_31] : memref<128x128xbf16, #tpu.memory_space<vmem>>, vector<128x128xbf16>
    %51 = arith.extf %50 : vector<128x128xbf16> to vector<128x128xf32>
    %cst_32 = arith.constant dense<0.000000e+00> : vector<8x128xf32>
    %52 = tpu.matmul %49, %51, %cst_32 {dimension_numbers = #tpu.dot_dimension_numbers<[1], [0], [0], [1], [0, 0, 1, 1], [], []>} : vector<8x128xf32>, vector<128x128xf32>, vector<8x128xf32> -> vector<8x128xf32>
    %c0_33 = arith.constant 0 : index
    %c0_34 = arith.constant 0 : index
    %53 = vector.load %arg4[%c0_33, %c0_34] : memref<1x128xf32, #tpu.memory_space<vmem>>, vector<1x128xf32>
    %54 = vector.broadcast %53 : vector<1x128xf32> to vector<8x128xf32>
    %55 = arith.addf %52, %54 : vector<8x128xf32>
    %cst_35 = arith.constant 0.000000e+00 : f32
    %56 = vector.broadcast %cst_35 : f32 to vector<8x128xf32>
    %57 = arith.maximumf %55, %56 : vector<8x128xf32>
    %c0_36 = arith.constant 0 : index
    %c0_37 = arith.constant 0 : index
    %58 = vector.load %arg5[%c0_36, %c0_37] : memref<128x128xbf16, #tpu.memory_space<vmem>>, vector<128x128xbf16>
    %59 = arith.extf %58 : vector<128x128xbf16> to vector<128x128xf32>
    %cst_38 = arith.constant dense<0.000000e+00> : vector<8x128xf32>
    %60 = tpu.matmul %57, %59, %cst_38 {dimension_numbers = #tpu.dot_dimension_numbers<[1], [0], [0], [1], [0, 0, 1, 1], [], []>} : vector<8x128xf32>, vector<128x128xf32>, vector<8x128xf32> -> vector<8x128xf32>
    %c0_39 = arith.constant 0 : index
    %c0_40 = arith.constant 0 : index
    %61 = vector.load %arg6[%c0_39, %c0_40] : memref<1x128xf32, #tpu.memory_space<vmem>>, vector<1x128xf32>
    %62 = vector.broadcast %61 : vector<1x128xf32> to vector<8x128xf32>
    %63 = arith.addf %60, %62 : vector<8x128xf32>
    %cst_41 = arith.constant 0.000000e+00 : f32
    %64 = vector.broadcast %cst_41 : f32 to vector<8x128xf32>
    %65 = arith.maximumf %63, %64 : vector<8x128xf32>
    %c0_42 = arith.constant 0 : index
    %c0_43 = arith.constant 0 : index
    %66 = vector.load %arg7[%c0_42, %c0_43] : memref<128x128xbf16, #tpu.memory_space<vmem>>, vector<128x128xbf16>
    %67 = arith.extf %66 : vector<128x128xbf16> to vector<128x128xf32>
    %cst_44 = arith.constant dense<0.000000e+00> : vector<8x128xf32>
    %68 = tpu.matmul %65, %67, %cst_44 {dimension_numbers = #tpu.dot_dimension_numbers<[1], [0], [0], [1], [0, 0, 1, 1], [], []>} : vector<8x128xf32>, vector<128x128xf32>, vector<8x128xf32> -> vector<8x128xf32>
    %c0_45 = arith.constant 0 : index
    %c0_46 = arith.constant 0 : index
    %69 = vector.load %arg8[%c0_45, %c0_46] : memref<1x128xf32, #tpu.memory_space<vmem>>, vector<1x128xf32>
    %70 = vector.broadcast %69 : vector<1x128xf32> to vector<8x128xf32>
    %71 = arith.addf %68, %70 : vector<8x128xf32>
    %c0_47 = arith.constant 0 : index
    %c0_48 = arith.constant 0 : index
    %72 = vector.load %arg9[%c0_47, %c0_48] : memref<8x128xf32, #tpu.memory_space<vmem>>, vector<8x128xf32>
    tpu.vector_store %arg9[%c0_47, %c0_48], %71 {strides = array<i32>} : memref<8x128xf32, #tpu.memory_space<vmem>>, vector<8x128xf32>,
    return
  }
}

</mosaic_0001>

<llo_original>
// kernel: model_plus_linear_layers.1
$region0: #{model_plus_linear_layers.1}
  #allocation0 [shape = 'u32[]', space=smem, size = 0x4, offset = 0x4, fixed_abs, tag = 'smem constant byte address 0x4 - core index']
  #allocation1 [shape = 'u32[72,128]{1,0:T(1,128)}', space=vmem, size = 0x9000, scoped, tag = 'internal scratch']
  #allocation2 [shape = 'f32[8,128]{1,0:T(8,128)}', space=vmem, size = 0x1000, scoped, tag = 'scratch operand']
  %s0 = inlined_call_operand.vmem [shape: f32[8,2048], index: 0, kind: input, shape index: {}]
  %s1 = inlined_call_operand.vmem [shape: f32[8,128], index: 1, kind: input, shape index: {}]
  %s2 = inlined_call_operand.vmem [shape: f32[1,128], index: 2, kind: input, shape index: {}]
  %s3 = inlined_call_operand.vmem [shape: bf16[128,128], index: 3, kind: input, shape index: {}]
  %s4 = inlined_call_operand.vmem [shape: f32[1,128], index: 4, kind: input, shape index: {}]
  %s5 = inlined_call_operand.vmem [shape: bf16[128,128], index: 5, kind: input, shape index: {}]
  %s6 = inlined_call_operand.vmem [shape: f32[1,128], index: 6, kind: input, shape index: {}]
  %s7 = inlined_call_operand.vmem [shape: bf16[128,128], index: 7, kind: input, shape index: {}]
  %s8 = inlined_call_operand.vmem [shape: f32[1,128], index: 8, kind: input, shape index: {}]
  %s9 = inlined_call_operand.hbm [shape: f32[8,128], index: 9, kind: output, shape index: {}]
  %s10 = sld [smem:[#allocation0]]
  $region46: #{model_plus_linear_layers.1} parent=0
    _
  %s12 = ssub.s32 1, %s10
  %s13 = scalar_select 0, %s12, %s10
  $region1: #{model_plus_linear_layers.1} parent=0
    #allocation3 [shape = 'u8[4096]{0}', space=vmem, size = 0x1000, scoped, tag = 'output window, operand 0, single buffered']
    #allocation4 [shape = 's32[1]{0}', space=sflag, size = 0x4, scoped, tag = 'scoped memory for model_plus_linear_layers.1']
    %14 = vsyncpa [#allocation4], 0
    // Predicated region
    $region2: #{model_plus_linear_layers.1} parent=1 // pred_check
      _
    $region3: #{model_plus_linear_layers.1} parent=1 // pred_check_branch
      %16 = sbr.rel (0) target = $region5
    $region4: #{model_plus_linear_layers.1} parent=1 // pred_region
      _
    $region5: #{model_plus_linear_layers.1} parent=1 // pred_fallthru
      _
    // Predicated region
    $region6: #{model_plus_linear_layers.1} parent=1 // pred_check
      _
    $region7: #{model_plus_linear_layers.1} parent=1 // pred_check_branch
      %18 = sbr.rel (0) target = $region9
    $region8: #{model_plus_linear_layers.1} parent=1 // pred_region
      _
    $region9: #{model_plus_linear_layers.1} parent=1 // pred_fallthru
      _
    // Predicated region
    $region10: #{model_plus_linear_layers.1} parent=1 // pred_check
      _
    $region11: #{model_plus_linear_layers.1} parent=1 // pred_check_branch
      %20 = sbr.rel (0) target = $region13
    $region12: #{model_plus_linear_layers.1} parent=1 // pred_region
      _
    $region13: #{model_plus_linear_layers.1} parent=1 // pred_fallthru
      _
    // Predicated region
    $region14: #{model_plus_linear_layers.1} parent=1 // pred_check
      _
    $region15: #{model_plus_linear_layers.1} parent=1 // pred_check_branch
      %22 = sbr.rel (0) target = $region17
    $region16: #{model_plus_linear_layers.1} parent=1 // pred_region
      _
    $region17: #{model_plus_linear_layers.1} parent=1 // pred_fallthru
      _
    // Predicated region
    $region18: #{model_plus_linear_layers.1} parent=1 // pred_check
      _
    $region19: #{model_plus_linear_layers.1} parent=1 // pred_check_branch
      %24 = sbr.rel (0) target = $region21
    $region20: #{model_plus_linear_layers.1} parent=1 // pred_region
      _
    $region21: #{model_plus_linear_layers.1} parent=1 // pred_fallthru
      _
    // Predicated region
    $region22: #{model_plus_linear_layers.1} parent=1 // pred_check
      _
    $region23: #{model_plus_linear_layers.1} parent=1 // pred_check_branch
      %26 = sbr.rel (0) target = $region25
    $region24: #{model_plus_linear_layers.1} parent=1 // pred_region
      _
    $region25: #{model_plus_linear_layers.1} parent=1 // pred_fallthru
      _
    // Predicated region
    $region26: #{model_plus_linear_layers.1} parent=1 // pred_check
      _
    $region27: #{model_plus_linear_layers.1} parent=1 // pred_check_branch
      %28 = sbr.rel (0) target = $region29
    $region28: #{model_plus_linear_layers.1} parent=1 // pred_region
      _
    $region29: #{model_plus_linear_layers.1} parent=1 // pred_fallthru
      _
    // Predicated region
    $region30: #{model_plus_linear_layers.1} parent=1 // pred_check
      _
    $region31: #{model_plus_linear_layers.1} parent=1 // pred_check_branch
      %30 = sbr.rel (0) target = $region33
    $region32: #{model_plus_linear_layers.1} parent=1 // pred_region
      _
    $region33: #{model_plus_linear_layers.1} parent=1 // pred_fallthru
      _
    // Predicated region
    $region34: #{model_plus_linear_layers.1} parent=1 // pred_check
      _
    $region35: #{model_plus_linear_layers.1} parent=1 // pred_check_branch
      %32 = sbr.rel (0) target = $region37
    $region36: #{model_plus_linear_layers.1} parent=1 // pred_region
      _
    $region37: #{model_plus_linear_layers.1} parent=1 // pred_fallthru
      _
    %v33 = vld [vmem:[%s0] sm:$0xff]
    %v34 = vld [vmem:[%s0 + $0x8] sm:$0xff]
    %v35 = vadd.f32 %v33, %v34
    %v36 = vld [vmem:[%s0 + $0x10] sm:$0xff]
    %v37 = vadd.f32 %v35, %v36
    %v38 = vld [vmem:[%s0 + $0x18] sm:$0xff]
    %v39 = vadd.f32 %v37, %v38
    %v40 = vld [vmem:[%s0 + $0x20] sm:$0xff]
    %v41 = vadd.f32 %v39, %v40
    %v42 = vld [vmem:[%s0 + $0x28] sm:$0xff]
    %v43 = vadd.f32 %v41, %v42
    %v44 = vld [vmem:[%s0 + $0x30] sm:$0xff]
    %v45 = vadd.f32 %v43, %v44
    %v46 = vld [vmem:[%s0 + $0x38] sm:$0xff]
    %v47 = vadd.f32 %v45, %v46
    %v48 = vld [vmem:[%s0 + $0x40] sm:$0xff]
    %v49 = vadd.f32 %v47, %v48
    %v50 = vld [vmem:[%s0 + $0x48] sm:$0xff]
    %v51 = vadd.f32 %v49, %v50
    %v52 = vld [vmem:[%s0 + $0x50] sm:$0xff]
    %v53 = vadd.f32 %v51, %v52
    %v54 = vld [vmem:[%s0 + $0x58] sm:$0xff]
    %v55 = vadd.f32 %v53, %v54
    %v56 = vld [vmem:[%s0 + $0x60] sm:$0xff]
    %v57 = vadd.f32 %v55, %v56
    %v58 = vld [vmem:[%s0 + $0x68] sm:$0xff]
    %v59 = vadd.f32 %v57, %v58
    %v60 = vld [vmem:[%s0 + $0x70] sm:$0xff]
    %v61 = vadd.f32 %v59, %v60
    %v62 = vld [vmem:[%s0 + $0x78] sm:$0xff]
    %v63 = vadd.f32 %v61, %v62
    %64 = vadd.xlane.f32.xlu0 %v63
    %v65 = vpop.xlane.xlu0 %64
    %v66 = vld [vmem:[%s1] sm:$0xff]
    %v67 = vmul.f32 %v65, %v66
    %68 = vst [vmem:[#allocation2] sm:$0xff] 0.0
    %vm69 = vcmask 1043456
    %v70 = vsel %vm69, %v67, 0.0
    %v71 = vrot.slane %v70, 4
    %v72 = vadd.f32 %v70, %v71
    %v73 = vrot.slane %v72, 2
    %v74 = vadd.f32 %v72, %v73
    %v75 = vrot.slane %v74, 1
    %v76 = vadd.f32 %v74, %v75
    %77 = vst [vmem:[#allocation2] sm:$0x1] %v76
    %v79 = vrot.slane %v67, 4
    %v81 = vsel %vm69, %v79, 0.0
    %v82 = vrot.slane %v81, 4
    %v83 = vadd.f32 %v81, %v82
    %v84 = vrot.slane %v83, 2
    %v85 = vadd.f32 %v83, %v84
    %v86 = vrot.slane %v85, 1
    %v87 = vadd.f32 %v85, %v86
    %88 = vst [vmem:[#allocation2 + $0x1] sm:$0x1] %v87
    %v89 = vld [vmem:[#allocation2] sm:$0xff]
    %v90 = vld [vmem:[%s2] sm:$0x1]
    %v92 = vperm.slane %v90, 0
    %v94 = vadd.f32 %v89, %v92
    %v95 = vld [vmem:[%s3] sm:$0xf]
    %v96 = vld [vmem:[%s3 + $0x4] sm:$0xf]
    %v97 = vld [vmem:[%s3 + $0x8] sm:$0xf]
    %v98 = vld [vmem:[%s3 + $0xc] sm:$0xf]
    %v99 = vld [vmem:[%s3 + $0x10] sm:$0xf]
    %v100 = vld [vmem:[%s3 + $0x14] sm:$0xf]
    %v101 = vld [vmem:[%s3 + $0x18] sm:$0xf]
    %v102 = vld [vmem:[%s3 + $0x1c] sm:$0xf]
    %v103 = vld [vmem:[%s3 + $0x20] sm:$0xf]
    %v104 = vld [vmem:[%s3 + $0x24] sm:$0xf]
    %v105 = vld [vmem:[%s3 + $0x28] sm:$0xf]
    %v106 = vld [vmem:[%s3 + $0x2c] sm:$0xf]
    %v107 = vld [vmem:[%s3 + $0x30] sm:$0xf]
    %v108 = vld [vmem:[%s3 + $0x34] sm:$0xf]
    %v109 = vld [vmem:[%s3 + $0x38] sm:$0xf]
    %v110 = vld [vmem:[%s3 + $0x3c] sm:$0xf]
    %v111 = vunpack.c.l.bf16 %v95
    %v112 = vunpack.c.l.bf16 %v96
    %v113 = vunpack.c.l.bf16 %v97
    %v114 = vunpack.c.l.bf16 %v98
    %v115 = vunpack.c.l.bf16 %v99
    %v116 = vunpack.c.l.bf16 %v100
    %v117 = vunpack.c.l.bf16 %v101
    %v118 = vunpack.c.l.bf16 %v102
    %v119 = vunpack.c.l.bf16 %v103
    %v120 = vunpack.c.l.bf16 %v104
    %v121 = vunpack.c.l.bf16 %v105
    %v122 = vunpack.c.l.bf16 %v106
    %v123 = vunpack.c.l.bf16 %v107
    %v124 = vunpack.c.l.bf16 %v108
    %v125 = vunpack.c.l.bf16 %v109
    %v126 = vunpack.c.l.bf16 %v110
    %v127 = vld [vmem:[%s4] sm:$0x1]
    %v129 = vperm.slane %v127, 0
    %131 = vmatpush.msra.mxu0 %v126
    %132 = vmatpush.msra.mxu0 %v125
    %133 = vmatpush.msra.mxu0 %v124
    %134 = vmatpush.msra.mxu0 %v123
    %135 = vmatpush.msra.mxu0 %v122
    %136 = vmatpush.msra.mxu0 %v121
    %137 = vmatpush.msra.mxu0 %v120
    %138 = vmatpush.msra.mxu0 %v119
    %139 = vmatpush.msra.mxu0 %v118
    %140 = vmatpush.msra.mxu0 %v117
    %141 = vmatpush.msra.mxu0 %v116
    %142 = vmatpush.msra.mxu0 %v115
    %143 = vmatpush.msra.mxu0 %v114
    %144 = vmatpush.msra.mxu0 %v113
    %145 = vmatpush.msra.mxu0 %v112
    %146 = vmatpush.msra.mxu0 %v111
    %147 = vmatmul.f32.gmra.mxu0 %v94
    %v148 = vpop.f32.mrf.mxu0
    %v149 = vadd.f32 %v129, %v148
    %150 = vdwg.mxu0
    %v151 = vmax.f32 %v149, 0.0
    %v152 = vld [vmem:[%s5] sm:$0xf]
    %v153 = vld [vmem:[%s5 + $0x4] sm:$0xf]
    %v154 = vld [vmem:[%s5 + $0x8] sm:$0xf]
    %v155 = vld [vmem:[%s5 + $0xc] sm:$0xf]
    %v156 = vld [vmem:[%s5 + $0x10] sm:$0xf]
    %v157 = vld [vmem:[%s5 + $0x14] sm:$0xf]
    %v158 = vld [vmem:[%s5 + $0x18] sm:$0xf]
    %v159 = vld [vmem:[%s5 + $0x1c] sm:$0xf]
    %v160 = vld [vmem:[%s5 + $0x20] sm:$0xf]
    %v161 = vld [vmem:[%s5 + $0x24] sm:$0xf]
    %v162 = vld [vmem:[%s5 + $0x28] sm:$0xf]
    %v163 = vld [vmem:[%s5 + $0x2c] sm:$0xf]
    %v164 = vld [vmem:[%s5 + $0x30] sm:$0xf]
    %v165 = vld [vmem:[%s5 + $0x34] sm:$0xf]
    %v166 = vld [vmem:[%s5 + $0x38] sm:$0xf]
    %v167 = vld [vmem:[%s5 + $0x3c] sm:$0xf]
    %v168 = vunpack.c.l.bf16 %v152
    %v169 = vunpack.c.l.bf16 %v153
    %v170 = vunpack.c.l.bf16 %v154
    %v171 = vunpack.c.l.bf16 %v155
    %v172 = vunpack.c.l.bf16 %v156
    %v173 = vunpack.c.l.bf16 %v157
    %v174 = vunpack.c.l.bf16 %v158
    %v175 = vunpack.c.l.bf16 %v159
    %v176 = vunpack.c.l.bf16 %v160
    %v177 = vunpack.c.l.bf16 %v161
    %v178 = vunpack.c.l.bf16 %v162
    %v179 = vunpack.c.l.bf16 %v163
    %v180 = vunpack.c.l.bf16 %v164
    %v181 = vunpack.c.l.bf16 %v165
    %v182 = vunpack.c.l.bf16 %v166
    %v183 = vunpack.c.l.bf16 %v167
    %v184 = vld [vmem:[%s6] sm:$0x1]
    %v186 = vperm.slane %v184, 0
    %188 = vmatpush.msra.mxu0 %v183
    %189 = vmatpush.msra.mxu0 %v182
    %190 = vmatpush.msra.mxu0 %v181
    %191 = vmatpush.msra.mxu0 %v180
    %192 = vmatpush.msra.mxu0 %v179
    %193 = vmatpush.msra.mxu0 %v178
    %194 = vmatpush.msra.mxu0 %v177
    %195 = vmatpush.msra.mxu0 %v176
    %196 = vmatpush.msra.mxu0 %v175
    %197 = vmatpush.msra.mxu0 %v174
    %198 = vmatpush.msra.mxu0 %v173
    %199 = vmatpush.msra.mxu0 %v172
    %200 = vmatpush.msra.mxu0 %v171
    %201 = vmatpush.msra.mxu0 %v170
    %202 = vmatpush.msra.mxu0 %v169
    %203 = vmatpush.msra.mxu0 %v168
    %204 = vmatmul.f32.gmra.mxu0 %v151
    %v205 = vpop.f32.mrf.mxu0
    %v206 = vadd.f32 %v186, %v205
    %207 = vdwg.mxu0
    %v208 = vmax.f32 %v206, 0.0
    %v209 = vld [vmem:[%s7] sm:$0xf]
    %v210 = vld [vmem:[%s7 + $0x4] sm:$0xf]
    %v211 = vld [vmem:[%s7 + $0x8] sm:$0xf]
    %v212 = vld [vmem:[%s7 + $0xc] sm:$0xf]
    %v213 = vld [vmem:[%s7 + $0x10] sm:$0xf]
    %v214 = vld [vmem:[%s7 + $0x14] sm:$0xf]
    %v215 = vld [vmem:[%s7 + $0x18] sm:$0xf]
    %v216 = vld [vmem:[%s7 + $0x1c] sm:$0xf]
    %v217 = vld [vmem:[%s7 + $0x20] sm:$0xf]
    %v218 = vld [vmem:[%s7 + $0x24] sm:$0xf]
    %v219 = vld [vmem:[%s7 + $0x28] sm:$0xf]
    %v220 = vld [vmem:[%s7 + $0x2c] sm:$0xf]
    %v221 = vld [vmem:[%s7 + $0x30] sm:$0xf]
    %v222 = vld [vmem:[%s7 + $0x34] sm:$0xf]
    %v223 = vld [vmem:[%s7 + $0x38] sm:$0xf]
    %v224 = vld [vmem:[%s7 + $0x3c] sm:$0xf]
    %v225 = vunpack.c.l.bf16 %v209
    %v226 = vunpack.c.l.bf16 %v210
    %v227 = vunpack.c.l.bf16 %v211
    %v228 = vunpack.c.l.bf16 %v212
    %v229 = vunpack.c.l.bf16 %v213
    %v230 = vunpack.c.l.bf16 %v214
    %v231 = vunpack.c.l.bf16 %v215
    %v232 = vunpack.c.l.bf16 %v216
    %v233 = vunpack.c.l.bf16 %v217
    %v234 = vunpack.c.l.bf16 %v218
    %v235 = vunpack.c.l.bf16 %v219
    %v236 = vunpack.c.l.bf16 %v220
    %v237 = vunpack.c.l.bf16 %v221
    %v238 = vunpack.c.l.bf16 %v222
    %v239 = vunpack.c.l.bf16 %v223
    %v240 = vunpack.c.l.bf16 %v224
    %v241 = vld [vmem:[%s8] sm:$0x1]
    %v243 = vperm.slane %v241, 0
    %245 = vmatpush.msra.mxu0 %v240
    %246 = vmatpush.msra.mxu0 %v239
    %247 = vmatpush.msra.mxu0 %v238
    %248 = vmatpush.msra.mxu0 %v237
    %249 = vmatpush.msra.mxu0 %v236
    %250 = vmatpush.msra.mxu0 %v235
    %251 = vmatpush.msra.mxu0 %v234
    %252 = vmatpush.msra.mxu0 %v233
    %253 = vmatpush.msra.mxu0 %v232
    %254 = vmatpush.msra.mxu0 %v231
    %255 = vmatpush.msra.mxu0 %v230
    %256 = vmatpush.msra.mxu0 %v229
    %257 = vmatpush.msra.mxu0 %v228
    %258 = vmatpush.msra.mxu0 %v227
    %259 = vmatpush.msra.mxu0 %v226
    %260 = vmatpush.msra.mxu0 %v225
    %261 = vmatmul.f32.gmra.mxu0 %v208
    %v262 = vpop.f32.mrf.mxu0
    %v263 = vadd.f32 %v243, %v262
    %264 = vdwg.mxu0
    %265 = vst [vmem:[#allocation3] sm:$0xff] %v263
    // Predicated region
    $region38: #{model_plus_linear_layers.1} parent=1 // pred_check
      _
    $region39: #{model_plus_linear_layers.1} parent=1 // pred_check_branch
      %267 = sbr.rel (0) target = $region41
    $region40: #{model_plus_linear_layers.1} parent=1 // pred_region
      %269 = vsyncadd [#allocation4], 0
      %s271 = sshll.u32 [#allocation3], 4
      %s272 = int_to_ptr.vmem [resolvable:$true] %s271
      %s273 = sshll.u32 %s9, 4
      %s274 = int_to_ptr.hbm [resolvable:$true] %s273
      %276 = dma.vmem_to_hbm [thread:$0]  %s272, 128, %s274, [#allocation4]
    $region41: #{model_plus_linear_layers.1} parent=1 // pred_fallthru
      _
    // Predicated region
    $region42: #{model_plus_linear_layers.1} parent=1 // pred_check
      _
    $region43: #{model_plus_linear_layers.1} parent=1 // pred_check_branch
      %278 = sbr.rel (0) target = $region45
    $region44: #{model_plus_linear_layers.1} parent=1 // pred_region
      %280 = dma.done [#allocation4], 128
    $region45: #{model_plus_linear_layers.1} parent=1 // pred_fallthru
      _
    %281 = vsyncpa [#allocation4], 1

</llo_original>
